<compile_context>
chip_gen: v5e
topology: v5e:2x2
jax: 0.10.0
libtpu: 0.0.40
codegen_flags: <defaults>
</compile_context>

<pallas_src>
import math

import jax
import jax.numpy as jnp
from jax.experimental import pallas as pl
from jax.experimental.pallas import tpu as pltpu


def _round_up(x, m):
    return ((x + m - 1) // m) * m


def _daa_kernel(q_ref, keys_ref,
                wqs_ref, bqs_ref,      # [Wq | W_self_fused] : (Dp, 2Dp) / (1, 2Dp)
                wkv_ref, bkv_ref,      # [Wk_cross | Wv_cross]
                woc_ref, boc_ref,      # cross out_proj
                hb_ref,                # head-broadcast matrix (scale folded), bf16
                out_ref):
    f32 = jnp.float32
    q = q_ref[...]                                   # (Tb, Dp) compute dtype (bf16)
    cdt = q.dtype
    Tb, Dp = q.shape
    n_keys = keys_ref.shape[0]
    hb = hb_ref[...]

    # ---- fused Q / self projection: one (Tb,Dp)x(Dp,2Dp) MXU matmul ----
    qs = jnp.dot(q, wqs_ref[...], preferred_element_type=f32) + bqs_ref[...]
    q_c = qs[:, :Dp]          # shared Q projection (cross branch)
    self_out = qs[:, Dp:]     # seq-len-1 self branch == out_proj(v_proj(q))

    # hoist the bias broadcast out of the unrolled key loop (no CSE in JAX)
    bkv = jnp.broadcast_to(bkv_ref[...], (Tb, 2 * Dp))

    # ---- cross branch: single-pass online softmax over N difference keys ----
    m = None
    num = None
    den = None
    for n in range(n_keys):
        diff = q - keys_ref[n]                                       # bf16 (Tb, Dp)
        kv = jnp.dot(diff, wkv_ref[...], preferred_element_type=f32) + bkv
        k_n = kv[:, :Dp]
        v_n = kv[:, Dp:]
        # per-head score broadcast back to feature width; bf16 x bf16, f32 acc
        s = jnp.dot((q_c * k_n).astype(cdt), hb, preferred_element_type=f32)
        if n == 0:
            m = s
            num = v_n                     # exp(s - m) == 1
            den = jnp.ones_like(s)
        else:
            m_new = jnp.maximum(m, s)
            a = jnp.exp(m - m_new)
            e = jnp.exp(s - m_new)
            num = a * num + e * v_n
            den = a * den + e
            m = m_new

    attn_out = num * pl.reciprocal(den, approx=True)
    cross_out = (jnp.dot(attn_out.astype(cdt), woc_ref[...],
                         preferred_element_type=f32) + boc_ref[...])

    out_ref[...] = (self_out + cross_out).astype(out_ref.dtype)


def prepare_daa_params(params, *, num_heads=4, compute_dtype=jnp.bfloat16):
    """One-time weight prep: transpose (PyTorch (out,in) -> (in,out)), fuse the
    self branch, concatenate projections, zero-pad to lane-dense Dp, cast."""
    (wq, bq, wkc, bkc, wvc, bvc, woc, boc, wvs, bvs, wos, bos) = [
        jnp.asarray(p, jnp.float32) for p in params]
    D = wq.shape[0]
    assert D % num_heads == 0
    dh = D // num_heads
    Dp = max(128, _round_up(D, 128))

    # self branch (seq-len 1 -> softmax == 1) folds into one affine map:
    #   self_out = q @ (Wvs^T Wos^T) + (bvs Wos^T + bos)
    w_self = wvs.T @ wos.T
    b_self = bvs @ wos.T + bos

    def pad_cat_w(w_left_t, w_right_t):
        out = jnp.zeros((Dp, 2 * Dp), jnp.float32)
        out = out.at[:D, :D].set(w_left_t)
        out = out.at[:D, Dp:Dp + D].set(w_right_t)
        return out.astype(compute_dtype)

    def pad_cat_b(b_left, b_right):
        out = jnp.zeros((1, 2 * Dp), jnp.float32)
        out = out.at[0, :D].set(b_left)
        out = out.at[0, Dp:Dp + D].set(b_right)
        return out

    wqs_cat = pad_cat_w(wq.T, w_self)            # [Wq | W_self]
    bqs_cat = pad_cat_b(bq, b_self)
    wkv_cat = pad_cat_w(wkc.T, wvc.T)            # [Wk_cross | Wv_cross]
    bkv_cat = pad_cat_b(bkc, bvc)

    woc_p = jnp.zeros((Dp, Dp), compute_dtype).at[:D, :D].set(
        woc.T.astype(compute_dtype))
    boc_p = jnp.zeros((1, Dp), jnp.float32).at[0, :D].set(boc)

    # Head-broadcast matrix: hb[d,d'] = 1/sqrt(dh) if head(d)==head(d') else 0.
    # Padded lanes fold onto the last head so the softmax denominator is > 0 on
    # every lane; zero-padded weights/biases guarantee padded lanes never
    # contaminate real ones. 1/sqrt(dh) is exact in bf16 for power-of-two dh.
    head_of = jnp.minimum(jnp.arange(Dp) // dh, num_heads - 1)
    hb = ((head_of[:, None] == head_of[None, :]).astype(jnp.float32)
          / math.sqrt(float(dh))).astype(compute_dtype)

    return (wqs_cat, bqs_cat, wkv_cat, bkv_cat, woc_p, boc_p, hb)


def difference_aware_attention_forward(query, key_list, prepped, *,
                                       max_batch_tile=512):
    """Pallas forward of DifferenceawareAttention. Returns (B, D) float32."""
    wqs_cat, bqs_cat, wkv_cat, bkv_cat, woc_p, boc_p, hb = prepped
    cdt = wqs_cat.dtype
    Dp = woc_p.shape[0]
    B, D = query.shape
    n_keys = len(key_list)
    keys = jnp.stack(key_list, axis=0)                       # (N, B, D)

    itemsize = jnp.dtype(cdt).itemsize
    sub = 8 * max(1, 4 // itemsize)                          # sublane pack (16 for bf16)
    Bp_min = _round_up(B, sub)
    Tb = min(_round_up(max_batch_tile, sub), Bp_min)
    # v7x megacore: keep >= 2 grid steps when the batch allows so the
    # "parallel" axis can shard across both TensorCores (also trims padding).
    if Bp_min // Tb < 2 and Bp_min >= 2 * sub:
        Tb = _round_up(pl.cdiv(B, 2), sub)
    Bp = _round_up(B, Tb)

    # per-call work: only the batch-scaled operands are padded / cast
    qp = jnp.zeros((Bp, Dp), cdt).at[:B, :D].set(query.astype(cdt))
    kp = jnp.zeros((n_keys, Bp, Dp), cdt).at[:, :B, :D].set(keys.astype(cdt))

    def full(shape):
        return pl.BlockSpec(shape, lambda i: (0,) * len(shape))

    grid_spec = pltpu.PrefetchScalarGridSpec(
        num_scalar_prefetch=0,
        grid=(Bp // Tb,),
        in_specs=[
            pl.BlockSpec((Tb, Dp), lambda i: (i, 0)),             # query tile
            pl.BlockSpec((n_keys, Tb, Dp), lambda i: (0, i, 0)),  # stacked keys
            full((Dp, 2 * Dp)), full((1, 2 * Dp)),                # [Wq | W_self]
            full((Dp, 2 * Dp)), full((1, 2 * Dp)),                # [Wk | Wv] cross
            full((Dp, Dp)), full((1, Dp)),                        # cross out_proj
            full((Dp, Dp)),                                       # head broadcast
        ],
        out_specs=pl.BlockSpec((Tb, Dp), lambda i: (i, 0)),
    )

    out = pl.pallas_call(
        _daa_kernel,
        out_shape=jax.ShapeDtypeStruct((Bp, Dp), jnp.float32),
        grid_spec=grid_spec,
        compiler_params=pltpu.CompilerParams(
            dimension_semantics=("parallel",),
            vmem_limit_bytes=32 * 1024 * 1024),
    )(qp, kp, wqs_cat, bqs_cat, wkv_cat, bkv_cat, woc_p, boc_p, hb)

    return out[:B, :D]


# ---------------- reference (pure jnp, float32, PyTorch layout) ----------------
def init_params(key, D):
    ks = jax.random.split(key, 12)

    def u(k, shape, fan_in):
        bound = 1.0 / math.sqrt(fan_in)
        return jax.random.uniform(k, shape, jnp.float32, -bound, bound)

    wq, bq = u(ks[0], (D, D), D), u(ks[1], (D,), D)          # shared Q proj
    wkc, bkc = u(ks[2], (D, D), D), u(ks[3], (D,), D)        # cross K
    wvc, bvc = u(ks[4], (D, D), D), u(ks[5], (D,), D)        # cross V
    woc, boc = u(ks[6], (D, D), D), u(ks[7], (D,), D)        # cross out_proj
    wvs, bvs = u(ks[8], (D, D), D), u(ks[9], (D,), D)        # self V
    wos, bos = u(ks[10], (D, D), D), u(ks[11], (D,), D)      # self out_proj
    return (wq, bq, wkc, bkc, wvc, bvc, woc, boc, wvs, bvs, wos, bos)


def reference_forward(query, key_list, params, num_heads):
    (wq, bq, wkc, bkc, wvc, bvc, woc, boc, wvs, bvs, wos, bos) = params
    B, D = query.shape
    H, dh = num_heads, D // num_heads

    # self-attention over a single token: softmax over one key == 1
    v_s = query @ wvs.T + bvs
    self_out = v_s @ wos.T + bos

    keys = jnp.stack(key_list, axis=1)            # (B, N, D)
    diff = query[:, None, :] - keys               # difference-aware keys/values
    q_c = query @ wq.T + bq                       # shared Q projection
    k_c = diff @ wkc.T + bkc
    v_c = diff @ wvc.T + bvc

    q_h = q_c.reshape(B, H, dh)
    k_h = k_c.reshape(B, -1, H, dh)
    v_h = v_c.reshape(B, -1, H, dh)
    scores = jnp.einsum('bhd,bnhd->bhn', q_h, k_h) / math.sqrt(float(dh))
    attn = jax.nn.softmax(scores, axis=-1)
    ctx = jnp.einsum('bhn,bnhd->bhd', attn, v_h).reshape(B, D)
    cross_out = ctx @ woc.T + boc
    return self_out + cross_out


if __name__ == "__main__":
    B, D, H, N = 8, 64, 4, 3
    key = jax.random.PRNGKey(0)
    kq, kk, kp = jax.random.split(key, 3)
    query = jax.random.normal(kq, (B, D), jnp.float32)
    key_keys = jax.random.split(kk, N)
    key_list = [jax.random.normal(key_keys[n], (B, D), jnp.float32)
                for n in range(N)]
    params = init_params(kp, D)

    prepped = prepare_daa_params(params, num_heads=H)   # one-time weight prep
    out = difference_aware_attention_forward(query, key_list, prepped)
    jax.block_until_ready(out)

    ref = reference_forward(query, key_list, params, H)
    assert out.shape == (B, D)
    max_err = float(jnp.max(jnp.abs(out - ref)))
    # bf16 MXU operands (inputs, weights, score path) with f32 accumulation
    assert jnp.allclose(out, ref, atol=2.5e-2, rtol=2.5e-2), max_err

    print("KERNEL_OK")
</pallas_src>

<mosaic_0001>
module attributes {stable_mosaic.version = 11 : i64} {
  func.func @_daa_kernel(%arg0: i32, %arg1: memref<16x128xbf16, #tpu.memory_space<vmem>>, %arg2: memref<3x16x128xbf16, #tpu.memory_space<vmem>>, %arg3: memref<128x256xbf16, #tpu.memory_space<vmem>>, %arg4: memref<1x256xf32, #tpu.memory_space<vmem>>, %arg5: memref<128x256xbf16, #tpu.memory_space<vmem>>, %arg6: memref<1x256xf32, #tpu.memory_space<vmem>>, %arg7: memref<128x128xbf16, #tpu.memory_space<vmem>>, %arg8: memref<1x128xf32, #tpu.memory_space<vmem>>, %arg9: memref<128x128xbf16, #tpu.memory_space<vmem>>, %arg10: memref<16x128xf32, #tpu.memory_space<vmem>>) attributes {dimension_semantics = [#tpu.dimension_semantics<parallel>], iteration_bounds = array<i64: 1>, scalar_prefetch = 0 : i64, scratch_operands = 0 : i64, tpu.core_type = #tpu.core_type<tc>, window_params = [{transform_indices = @transform_0, window_bounds = array<i64: 16, 128>}, {transform_indices = @transform_1, window_bounds = array<i64: 3, 16, 128>}, {pipeline_mode = #tpu.pipeline_mode<synchronous>, transform_indices = @transform_2, window_bounds = array<i64: 128, 256>}, {pipeline_mode = #tpu.pipeline_mode<synchronous>, transform_indices = @transform_3, window_bounds = array<i64: 1, 256>}, {pipeline_mode = #tpu.pipeline_mode<synchronous>, transform_indices = @transform_4, window_bounds = array<i64: 128, 256>}, {pipeline_mode = #tpu.pipeline_mode<synchronous>, transform_indices = @transform_5, window_bounds = array<i64: 1, 256>}, {pipeline_mode = #tpu.pipeline_mode<synchronous>, transform_indices = @transform_6, window_bounds = array<i64: 128, 128>}, {pipeline_mode = #tpu.pipeline_mode<synchronous>, transform_indices = @transform_7, window_bounds = array<i64: 1, 128>}, {pipeline_mode = #tpu.pipeline_mode<synchronous>, transform_indices = @transform_8, window_bounds = array<i64: 128, 128>}, {transform_indices = @transform_9, window_bounds = array<i64: 16, 128>}]} {
    %c0 = arith.constant 0 : index
    %c0_0 = arith.constant 0 : index
    %0 = vector.load %arg1[%c0, %c0_0] : memref<16x128xbf16, #tpu.memory_space<vmem>>, vector<16x128xbf16>
    %c0_1 = arith.constant 0 : index
    %c0_2 = arith.constant 0 : index
    %1 = vector.load %arg9[%c0_1, %c0_2] : memref<128x128xbf16, #tpu.memory_space<vmem>>, vector<128x128xbf16>
    %c0_3 = arith.constant 0 : index
    %c0_4 = arith.constant 0 : index
    %2 = vector.load %arg3[%c0_3, %c0_4] : memref<128x256xbf16, #tpu.memory_space<vmem>>, vector<128x256xbf16>
    %cst = arith.constant dense<0.000000e+00> : vector<16x256xf32>
    %3 = tpu.matmul %0, %2, %cst {dimension_numbers = #tpu.dot_dimension_numbers<[1], [0], [0], [1], [0, 0, 1, 1], [], []>} : vector<16x128xbf16>, vector<128x256xbf16>, vector<16x256xf32> -> vector<16x256xf32>
    %c0_5 = arith.constant 0 : index
    %c0_6 = arith.constant 0 : index
    %4 = vector.load %arg4[%c0_5, %c0_6] : memref<1x256xf32, #tpu.memory_space<vmem>>, vector<1x256xf32>
    %5 = vector.broadcast %4 : vector<1x256xf32> to vector<16x256xf32>
    %6 = arith.addf %3, %5 : vector<16x256xf32>
    %7 = vector.extract_strided_slice %6 {offsets = [0, 0], sizes = [16, 128], strides = [1, 1]} : vector<16x256xf32> to vector<16x128xf32>
    %8 = vector.extract_strided_slice %6 {offsets = [0, 128], sizes = [16, 128], strides = [1, 1]} : vector<16x256xf32> to vector<16x128xf32>
    %c0_7 = arith.constant 0 : index
    %c0_8 = arith.constant 0 : index
    %9 = vector.load %arg6[%c0_7, %c0_8] : memref<1x256xf32, #tpu.memory_space<vmem>>, vector<1x256xf32>
    %10 = vector.shape_cast %9 : vector<1x256xf32> to vector<1x256xf32>
    %11 = vector.broadcast %10 : vector<1x256xf32> to vector<16x256xf32>
    %c0_9 = arith.constant 0 : index
    %c0_10 = arith.constant 0 : index
    %c0_11 = arith.constant 0 : index
    %12 = vector.load %arg2[%c0_9, %c0_10, %c0_11] : memref<3x16x128xbf16, #tpu.memory_space<vmem>>, vector<1x16x128xbf16>
    %13 = vector.shape_cast %12 : vector<1x16x128xbf16> to vector<16x128xbf16>
    %14 = arith.subf %0, %13 : vector<16x128xbf16>
    %c0_12 = arith.constant 0 : index
    %c0_13 = arith.constant 0 : index
    %15 = vector.load %arg5[%c0_12, %c0_13] : memref<128x256xbf16, #tpu.memory_space<vmem>>, vector<128x256xbf16>
    %cst_14 = arith.constant dense<0.000000e+00> : vector<16x256xf32>
    %16 = tpu.matmul %14, %15, %cst_14 {dimension_numbers = #tpu.dot_dimension_numbers<[1], [0], [0], [1], [0, 0, 1, 1], [], []>} : vector<16x128xbf16>, vector<128x256xbf16>, vector<16x256xf32> -> vector<16x256xf32>
    %17 = arith.addf %16, %11 : vector<16x256xf32>
    %18 = vector.extract_strided_slice %17 {offsets = [0, 0], sizes = [16, 128], strides = [1, 1]} : vector<16x256xf32> to vector<16x128xf32>
    %19 = vector.extract_strided_slice %17 {offsets = [0, 128], sizes = [16, 128], strides = [1, 1]} : vector<16x256xf32> to vector<16x128xf32>
    %20 = arith.mulf %7, %18 : vector<16x128xf32>
    %21 = arith.truncf %20 : vector<16x128xf32> to vector<16x128xbf16>
    %cst_15 = arith.constant dense<0.000000e+00> : vector<16x128xf32>
    %22 = tpu.matmul %21, %1, %cst_15 {dimension_numbers = #tpu.dot_dimension_numbers<[1], [0], [0], [1], [0, 0, 1, 1], [], []>} : vector<16x128xbf16>, vector<128x128xbf16>, vector<16x128xf32> -> vector<16x128xf32>
    %cst_16 = arith.constant 1.000000e+00 : f32
    %23 = vector.broadcast %cst_16 : f32 to vector<16x128xf32>
    %c1 = arith.constant 1 : index
    %c0_17 = arith.constant 0 : index
    %c0_18 = arith.constant 0 : index
    %24 = vector.load %arg2[%c1, %c0_17, %c0_18] : memref<3x16x128xbf16, #tpu.memory_space<vmem>>, vector<1x16x128xbf16>
    %25 = vector.shape_cast %24 : vector<1x16x128xbf16> to vector<16x128xbf16>
    %26 = arith.subf %0, %25 : vector<16x128xbf16>
    %c0_19 = arith.constant 0 : index
    %c0_20 = arith.constant 0 : index
    %27 = vector.load %arg5[%c0_19, %c0_20] : memref<128x256xbf16, #tpu.memory_space<vmem>>, vector<128x256xbf16>
    %cst_21 = arith.constant dense<0.000000e+00> : vector<16x256xf32>
    %28 = tpu.matmul %26, %27, %cst_21 {dimension_numbers = #tpu.dot_dimension_numbers<[1], [0], [0], [1], [0, 0, 1, 1], [], []>} : vector<16x128xbf16>, vector<128x256xbf16>, vector<16x256xf32> -> vector<16x256xf32>
    %29 = arith.addf %28, %11 : vector<16x256xf32>
    %30 = vector.extract_strided_slice %29 {offsets = [0, 0], sizes = [16, 128], strides = [1, 1]} : vector<16x256xf32> to vector<16x128xf32>
    %31 = vector.extract_strided_slice %29 {offsets = [0, 128], sizes = [16, 128], strides = [1, 1]} : vector<16x256xf32> to vector<16x128xf32>
    %32 = arith.mulf %7, %30 : vector<16x128xf32>
    %33 = arith.truncf %32 : vector<16x128xf32> to vector<16x128xbf16>
    %cst_22 = arith.constant dense<0.000000e+00> : vector<16x128xf32>
    %34 = tpu.matmul %33, %1, %cst_22 {dimension_numbers = #tpu.dot_dimension_numbers<[1], [0], [0], [1], [0, 0, 1, 1], [], []>} : vector<16x128xbf16>, vector<128x128xbf16>, vector<16x128xf32> -> vector<16x128xf32>
    %35 = arith.maximumf %22, %34 : vector<16x128xf32>
    %36 = arith.subf %22, %35 : vector<16x128xf32>
    %37 = math.exp %36 : vector<16x128xf32>
    %38 = arith.subf %34, %35 : vector<16x128xf32>
    %39 = math.exp %38 : vector<16x128xf32>
    %40 = arith.mulf %37, %19 : vector<16x128xf32>
    %41 = arith.mulf %39, %31 : vector<16x128xf32>
    %42 = arith.addf %40, %41 : vector<16x128xf32>
    %43 = arith.mulf %37, %23 : vector<16x128xf32>
    %44 = arith.addf %43, %39 : vector<16x128xf32>
    %c2 = arith.constant 2 : index
    %c0_23 = arith.constant 0 : index
    %c0_24 = arith.constant 0 : index
    %45 = vector.load %arg2[%c2, %c0_23, %c0_24] : memref<3x16x128xbf16, #tpu.memory_space<vmem>>, vector<1x16x128xbf16>
    %46 = vector.shape_cast %45 : vector<1x16x128xbf16> to vector<16x128xbf16>
    %47 = arith.subf %0, %46 : vector<16x128xbf16>
    %c0_25 = arith.constant 0 : index
    %c0_26 = arith.constant 0 : index
    %48 = vector.load %arg5[%c0_25, %c0_26] : memref<128x256xbf16, #tpu.memory_space<vmem>>, vector<128x256xbf16>
    %cst_27 = arith.constant dense<0.000000e+00> : vector<16x256xf32>
    %49 = tpu.matmul %47, %48, %cst_27 {dimension_numbers = #tpu.dot_dimension_numbers<[1], [0], [0], [1], [0, 0, 1, 1], [], []>} : vector<16x128xbf16>, vector<128x256xbf16>, vector<16x256xf32> -> vector<16x256xf32>
    %50 = arith.addf %49, %11 : vector<16x256xf32>
    %51 = vector.extract_strided_slice %50 {offsets = [0, 0], sizes = [16, 128], strides = [1, 1]} : vector<16x256xf32> to vector<16x128xf32>
    %52 = vector.extract_strided_slice %50 {offsets = [0, 128], sizes = [16, 128], strides = [1, 1]} : vector<16x256xf32> to vector<16x128xf32>
    %53 = arith.mulf %7, %51 : vector<16x128xf32>
    %54 = arith.truncf %53 : vector<16x128xf32> to vector<16x128xbf16>
    %cst_28 = arith.constant dense<0.000000e+00> : vector<16x128xf32>
    %55 = tpu.matmul %54, %1, %cst_28 {dimension_numbers = #tpu.dot_dimension_numbers<[1], [0], [0], [1], [0, 0, 1, 1], [], []>} : vector<16x128xbf16>, vector<128x128xbf16>, vector<16x128xf32> -> vector<16x128xf32>
    %56 = arith.maximumf %35, %55 : vector<16x128xf32>
    %57 = arith.subf %35, %56 : vector<16x128xf32>
    %58 = math.exp %57 : vector<16x128xf32>
    %59 = arith.subf %55, %56 : vector<16x128xf32>
    %60 = math.exp %59 : vector<16x128xf32>
    %61 = arith.mulf %58, %42 : vector<16x128xf32>
    %62 = arith.mulf %60, %52 : vector<16x128xf32>
    %63 = arith.addf %61, %62 : vector<16x128xf32>
    %64 = arith.mulf %58, %44 : vector<16x128xf32>
    %65 = arith.addf %64, %60 : vector<16x128xf32>
    %66 = tpu.reciprocal %65 {approx = true} : vector<16x128xf32> -> vector<16x128xf32>
    %67 = arith.mulf %63, %66 : vector<16x128xf32>
    %68 = arith.truncf %67 : vector<16x128xf32> to vector<16x128xbf16>
    %c0_29 = arith.constant 0 : index
    %c0_30 = arith.constant 0 : index
    %69 = vector.load %arg7[%c0_29, %c0_30] : memref<128x128xbf16, #tpu.memory_space<vmem>>, vector<128x128xbf16>
    %cst_31 = arith.constant dense<0.000000e+00> : vector<16x128xf32>
    %70 = tpu.matmul %68, %69, %cst_31 {dimension_numbers = #tpu.dot_dimension_numbers<[1], [0], [0], [1], [0, 0, 1, 1], [], []>} : vector<16x128xbf16>, vector<128x128xbf16>, vector<16x128xf32> -> vector<16x128xf32>
    %c0_32 = arith.constant 0 : index
    %c0_33 = arith.constant 0 : index
    %71 = vector.load %arg8[%c0_32, %c0_33] : memref<1x128xf32, #tpu.memory_space<vmem>>, vector<1x128xf32>
    %72 = vector.broadcast %71 : vector<1x128xf32> to vector<16x128xf32>
    %73 = arith.addf %70, %72 : vector<16x128xf32>
    %74 = arith.addf %8, %73 : vector<16x128xf32>
    %c0_34 = arith.constant 0 : index
    %c0_35 = arith.constant 0 : index
    %75 = vector.load %arg10[%c0_34, %c0_35] : memref<16x128xf32, #tpu.memory_space<vmem>>, vector<16x128xf32>
    tpu.vector_store %arg10[%c0_34, %c0_35], %74 {strides = array<i32>} : memref<16x128xf32, #tpu.memory_space<vmem>>, vector<16x128xf32>,
    return
  }
  func.func @transform_0(%arg0: i32) -> (i32, i32) {
    %c0_i32 = arith.constant 0 : i32
    %c0_i32_0 = arith.constant 0 : i32
    return %arg0, %c0_i32 : i32, i32
  }
  func.func @transform_1(%arg0: i32) -> (i32, i32, i32) {
    %c0_i32 = arith.constant 0 : i32
    %c0_i32_0 = arith.constant 0 : i32
    %c0_i32_1 = arith.constant 0 : i32
    return %c0_i32, %arg0, %c0_i32_0 : i32, i32, i32
  }
  func.func @transform_2(%arg0: i32) -> (i32, i32) {
    %c0_i32 = arith.constant 0 : i32
    %c0_i32_0 = arith.constant 0 : i32
    %c0_i32_1 = arith.constant 0 : i32
    return %c0_i32, %c0_i32_0 : i32, i32
  }
  func.func @transform_3(%arg0: i32) -> (i32, i32) {
    %c0_i32 = arith.constant 0 : i32
    %c0_i32_0 = arith.constant 0 : i32
    %c0_i32_1 = arith.constant 0 : i32
    return %c0_i32, %c0_i32_0 : i32, i32
  }
  func.func @transform_4(%arg0: i32) -> (i32, i32) {
    %c0_i32 = arith.constant 0 : i32
    %c0_i32_0 = arith.constant 0 : i32
    %c0_i32_1 = arith.constant 0 : i32
    return %c0_i32, %c0_i32_0 : i32, i32
  }
  func.func @transform_5(%arg0: i32) -> (i32, i32) {
    %c0_i32 = arith.constant 0 : i32
    %c0_i32_0 = arith.constant 0 : i32
    %c0_i32_1 = arith.constant 0 : i32
    return %c0_i32, %c0_i32_0 : i32, i32
  }
  func.func @transform_6(%arg0: i32) -> (i32, i32) {
    %c0_i32 = arith.constant 0 : i32
    %c0_i32_0 = arith.constant 0 : i32
    %c0_i32_1 = arith.constant 0 : i32
    return %c0_i32, %c0_i32_0 : i32, i32
  }
  func.func @transform_7(%arg0: i32) -> (i32, i32) {
    %c0_i32 = arith.constant 0 : i32
    %c0_i32_0 = arith.constant 0 : i32
    %c0_i32_1 = arith.constant 0 : i32
    return %c0_i32, %c0_i32_0 : i32, i32
  }
  func.func @transform_8(%arg0: i32) -> (i32, i32) {
    %c0_i32 = arith.constant 0 : i32
    %c0_i32_0 = arith.constant 0 : i32
    %c0_i32_1 = arith.constant 0 : i32
    return %c0_i32, %c0_i32_0 : i32, i32
  }
  func.func @transform_9(%arg0: i32) -> (i32, i32) {
    %c0_i32 = arith.constant 0 : i32
    %c0_i32_0 = arith.constant 0 : i32
    return %arg0, %c0_i32 : i32, i32
  }
}

</mosaic_0001>

<llo_original>
// kernel: tpu_custom_call.1
$region0: #{tpu_custom_call.1}
  #allocation0 [shape = 'u32[]', space=smem, size = 0x4, offset = 0x4, fixed_abs, tag = 'smem constant byte address 0x4 - core index']
  #allocation1 [shape = 'u32[72,128]{1,0:T(1,128)}', space=vmem, size = 0x9000, scoped, tag = 'internal scratch']
  %s0 = inlined_call_operand.hbm [shape: bf16[16,128], index: 0, kind: input, shape index: {}]
  %s1 = inlined_call_operand.hbm [shape: bf16[3,16,128], index: 1, kind: input, shape index: {}]
  %s2 = inlined_call_operand.hbm [shape: bf16[128,256], index: 2, kind: input, shape index: {}]
  %s3 = inlined_call_operand.vmem [shape: f32[1,256], index: 3, kind: input, shape index: {}]
  %s4 = inlined_call_operand.hbm [shape: bf16[128,256], index: 4, kind: input, shape index: {}]
  %s5 = inlined_call_operand.vmem [shape: f32[1,256], index: 5, kind: input, shape index: {}]
  %s6 = inlined_call_operand.hbm [shape: bf16[128,128], index: 6, kind: input, shape index: {}]
  %s7 = inlined_call_operand.vmem [shape: f32[1,128], index: 7, kind: input, shape index: {}]
  %s8 = inlined_call_operand.hbm [shape: bf16[128,128], index: 8, kind: input, shape index: {}]
  %s9 = inlined_call_operand.hbm [shape: f32[16,128], index: 9, kind: output, shape index: {}]
  %s10 = sld [smem:[#allocation0]]
  $region70: #{tpu_custom_call.1} parent=0
    _
  %s12 = ssub.s32 1, %s10
  %s13 = scalar_select 0, %s12, %s10
  $region1: #{tpu_custom_call.1} parent=0
    #allocation2 [shape = 'u8[4096]{0}', space=vmem, size = 0x1000, scoped, tag = 'input window, operand 0, single buffered']
    #allocation3 [shape = 's32[1]{0}', space=sflag, size = 0x4, scoped, tag = 'scoped memory for tpu_custom_call.1']
    #allocation4 [shape = 's32[1]{0}', space=sflag, size = 0x4, scoped, tag = 'scoped memory for tpu_custom_call.1']
    #allocation5 [shape = 'u8[12288]{0}', space=vmem, size = 0x3000, scoped, tag = 'input window, operand 1, single buffered']
    #allocation6 [shape = 's32[1]{0}', space=sflag, size = 0x4, scoped, tag = 'scoped memory for tpu_custom_call.1']
    #allocation7 [shape = 'u8[65536]{0}', space=vmem, size = 0x10000, scoped, tag = 'input window, operand 2, single buffered']
    #allocation8 [shape = 'u8[65536]{0}', space=vmem, size = 0x10000, scoped, tag = 'input window, operand 4, single buffered']
    #allocation9 [shape = 's32[1]{0}', space=sflag, size = 0x4, scoped, tag = 'scoped memory for tpu_custom_call.1']
    #allocation10 [shape = 'u8[32768]{0}', space=vmem, size = 0x8000, scoped, tag = 'input window, operand 6, single buffered']
    #allocation11 [shape = 'u8[32768]{0}', space=vmem, size = 0x8000, scoped, tag = 'input window, operand 8, single buffered']
    #allocation12 [shape = 's32[1]{0}', space=sflag, size = 0x4, scoped, tag = 'scoped memory for tpu_custom_call.1']
    #allocation13 [shape = 'u8[8192]{0}', space=vmem, size = 0x2000, scoped, tag = 'output window, operand 0, single buffered']
    %14 = vsyncpa [#allocation3], 0
    %15 = vsyncpa [#allocation6], 0
    %16 = vsyncpa [#allocation9], 0
    %17 = vsyncpa [#allocation12], 0
    %18 = vsyncpa [#allocation4], 0
    // Predicated region
    $region2: #{tpu_custom_call.1} parent=1 // pred_check
      _
    $region3: #{tpu_custom_call.1} parent=1 // pred_check_branch
      %20 = sbr.rel (0) target = $region5
    $region4: #{tpu_custom_call.1} parent=1 // pred_region
      %22 = vsyncadd [#allocation3], 0
      %s23 = sshll.u32 %s0, 4
      %s24 = int_to_ptr.hbm [resolvable:$true] %s23
      %s25 = sshll.u32 [#allocation2], 4
      %s26 = int_to_ptr.vmem [resolvable:$true] %s25
      %31 = dma.hbm_to_vmem [thread:$0]  %s24, 128, %s26, [#allocation3], 64, 64, 4
    $region5: #{tpu_custom_call.1} parent=1 // pred_fallthru
      _
    // Predicated region
    $region6: #{tpu_custom_call.1} parent=1 // pred_check
      _
    $region7: #{tpu_custom_call.1} parent=1 // pred_check_branch
      %33 = sbr.rel (0) target = $region9
    $region8: #{tpu_custom_call.1} parent=1 // pred_region
      %35 = vsyncadd [#allocation6], 0
      %s36 = sshll.u32 %s1, 4
      %s37 = int_to_ptr.hbm [resolvable:$true] %s36
      %s38 = sshll.u32 [#allocation5], 4
      %s39 = int_to_ptr.vmem [resolvable:$true] %s38
      %44 = dma.hbm_to_vmem [thread:$0]  %s37, 384, %s39, [#allocation6], 64, 64, 4
    $region9: #{tpu_custom_call.1} parent=1 // pred_fallthru
      _
    // Predicated region
    $region10: #{tpu_custom_call.1} parent=1 // pred_check
      _
    $region11: #{tpu_custom_call.1} parent=1 // pred_check_branch
      %46 = sbr.rel (0) target = $region13
    $region12: #{tpu_custom_call.1} parent=1 // pred_region
      %48 = vsyncadd [#allocation6], 0
      %s49 = sshll.u32 %s2, 4
      %s50 = int_to_ptr.hbm [resolvable:$true] %s49
      %s51 = sshll.u32 [#allocation7], 4
      %s52 = int_to_ptr.vmem [resolvable:$true] %s51
      %57 = dma.hbm_to_vmem [thread:$0]  %s50, 2048, %s52, [#allocation6], 128, 128, 8
    $region13: #{tpu_custom_call.1} parent=1 // pred_fallthru
      _
    // Predicated region
    $region14: #{tpu_custom_call.1} parent=1 // pred_check
      _
    $region15: #{tpu_custom_call.1} parent=1 // pred_check_branch
      %59 = sbr.rel (0) target = $region17
    $region16: #{tpu_custom_call.1} parent=1 // pred_region
      _
    $region17: #{tpu_custom_call.1} parent=1 // pred_fallthru
      _
    // Predicated region
    $region18: #{tpu_custom_call.1} parent=1 // pred_check
      _
    $region19: #{tpu_custom_call.1} parent=1 // pred_check_branch
      %61 = sbr.rel (0) target = $region21
    $region20: #{tpu_custom_call.1} parent=1 // pred_region
      %63 = vsyncadd [#allocation9], 0
      %s64 = sshll.u32 %s4, 4
      %s65 = int_to_ptr.hbm [resolvable:$true] %s64
      %s66 = sshll.u32 [#allocation8], 4
      %s67 = int_to_ptr.vmem [resolvable:$true] %s66
      %72 = dma.hbm_to_vmem [thread:$0]  %s65, 2048, %s67, [#allocation9], 128, 128, 8
    $region21: #{tpu_custom_call.1} parent=1 // pred_fallthru
      _
    // Predicated region
    $region22: #{tpu_custom_call.1} parent=1 // pred_check
      _
    $region23: #{tpu_custom_call.1} parent=1 // pred_check_branch
      %74 = sbr.rel (0) target = $region25
    $region24: #{tpu_custom_call.1} parent=1 // pred_region
      _
    $region25: #{tpu_custom_call.1} parent=1 // pred_fallthru
      _
    // Predicated region
    $region26: #{tpu_custom_call.1} parent=1 // pred_check
      _
    $region27: #{tpu_custom_call.1} parent=1 // pred_check_branch
      %76 = sbr.rel (0) target = $region29
    $region28: #{tpu_custom_call.1} parent=1 // pred_region
      %78 = vsyncadd [#allocation9], 0
      %s79 = sshll.u32 %s6, 4
      %s80 = int_to_ptr.hbm [resolvable:$true] %s79
      %s81 = sshll.u32 [#allocation10], 4
      %s82 = int_to_ptr.vmem [resolvable:$true] %s81
      %87 = dma.hbm_to_vmem [thread:$0]  %s80, 1024, %s82, [#allocation9], 64, 64, 4
    $region29: #{tpu_custom_call.1} parent=1 // pred_fallthru
      _
    // Predicated region
    $region30: #{tpu_custom_call.1} parent=1 // pred_check
      _
    $region31: #{tpu_custom_call.1} parent=1 // pred_check_branch
      %89 = sbr.rel (0) target = $region33
    $region32: #{tpu_custom_call.1} parent=1 // pred_region
      _
    $region33: #{tpu_custom_call.1} parent=1 // pred_fallthru
      _
    // Predicated region
    $region34: #{tpu_custom_call.1} parent=1 // pred_check
      _
    $region35: #{tpu_custom_call.1} parent=1 // pred_check_branch
      %91 = sbr.rel (0) target = $region37
    $region36: #{tpu_custom_call.1} parent=1 // pred_region
      %93 = vsyncadd [#allocation12], 0
      %s94 = sshll.u32 %s8, 4
      %s95 = int_to_ptr.hbm [resolvable:$true] %s94
      %s96 = sshll.u32 [#allocation11], 4
      %s97 = int_to_ptr.vmem [resolvable:$true] %s96
      %102 = dma.hbm_to_vmem [thread:$0]  %s95, 1024, %s97, [#allocation12], 64, 64, 4
    $region37: #{tpu_custom_call.1} parent=1 // pred_fallthru
      _
    // Predicated region
    $region38: #{tpu_custom_call.1} parent=1 // pred_check
      _
    $region39: #{tpu_custom_call.1} parent=1 // pred_check_branch
      %104 = sbr.rel (0) target = $region41
    $region40: #{tpu_custom_call.1} parent=1 // pred_region
      %106 = dma.done [#allocation3], 128
    $region41: #{tpu_custom_call.1} parent=1 // pred_fallthru
      _
    // Predicated region
    $region42: #{tpu_custom_call.1} parent=1 // pred_check
      _
    $region43: #{tpu_custom_call.1} parent=1 // pred_check_branch
      %108 = sbr.rel (0) target = $region45
    $region44: #{tpu_custom_call.1} parent=1 // pred_region
      %110 = dma.done [#allocation6], 384
    $region45: #{tpu_custom_call.1} parent=1 // pred_fallthru
      _
    // Predicated region
    $region46: #{tpu_custom_call.1} parent=1 // pred_check
      _
    $region47: #{tpu_custom_call.1} parent=1 // pred_check_branch
      %112 = sbr.rel (0) target = $region49
    $region48: #{tpu_custom_call.1} parent=1 // pred_region
      %114 = dma.done [#allocation6], 2048
    $region49: #{tpu_custom_call.1} parent=1 // pred_fallthru
      _
    // Predicated region
    $region50: #{tpu_custom_call.1} parent=1 // pred_check
      _
    $region51: #{tpu_custom_call.1} parent=1 // pred_check_branch
      %116 = sbr.rel (0) target = $region53
    $region52: #{tpu_custom_call.1} parent=1 // pred_region
      %118 = dma.done [#allocation9], 2048
    $region53: #{tpu_custom_call.1} parent=1 // pred_fallthru
      _
    // Predicated region
    $region54: #{tpu_custom_call.1} parent=1 // pred_check
      _
    $region55: #{tpu_custom_call.1} parent=1 // pred_check_branch
      %120 = sbr.rel (0) target = $region57
    $region56: #{tpu_custom_call.1} parent=1 // pred_region
      %122 = dma.done [#allocation9], 1024
    $region57: #{tpu_custom_call.1} parent=1 // pred_fallthru
      _
    // Predicated region
    $region58: #{tpu_custom_call.1} parent=1 // pred_check
      _
    $region59: #{tpu_custom_call.1} parent=1 // pred_check_branch
      %124 = sbr.rel (0) target = $region61
    $region60: #{tpu_custom_call.1} parent=1 // pred_region
      %126 = dma.done [#allocation12], 1024
    $region61: #{tpu_custom_call.1} parent=1 // pred_fallthru
      _
    %v127 = vld [vmem:[#allocation2] sm:$0xf]
    %v128 = vld [vmem:[#allocation2 + $0x4] sm:$0xf]
    %v129 = vld [vmem:[#allocation11] sm:$0xf]
    %v130 = vld [vmem:[#allocation11 + $0x4] sm:$0xf]
    %v131 = vld [vmem:[#allocation11 + $0x8] sm:$0xf]
    %v132 = vld [vmem:[#allocation11 + $0xc] sm:$0xf]
    %v133 = vld [vmem:[#allocation11 + $0x10] sm:$0xf]
    %v134 = vld [vmem:[#allocation11 + $0x14] sm:$0xf]
    %v135 = vld [vmem:[#allocation11 + $0x18] sm:$0xf]
    %v136 = vld [vmem:[#allocation11 + $0x1c] sm:$0xf]
    %v137 = vld [vmem:[#allocation11 + $0x20] sm:$0xf]
    %v138 = vld [vmem:[#allocation11 + $0x24] sm:$0xf]
    %v139 = vld [vmem:[#allocation11 + $0x28] sm:$0xf]
    %v140 = vld [vmem:[#allocation11 + $0x2c] sm:$0xf]
    %v141 = vld [vmem:[#allocation11 + $0x30] sm:$0xf]
    %v142 = vld [vmem:[#allocation11 + $0x34] sm:$0xf]
    %v143 = vld [vmem:[#allocation11 + $0x38] sm:$0xf]
    %v144 = vld [vmem:[#allocation11 + $0x3c] sm:$0xf]
    %v145 = vld [vmem:[#allocation7] sm:$0xff]
    %v146 = vld [vmem:[#allocation7 + $0x8] sm:$0xff]
    %v147 = vld [vmem:[#allocation7 + $0x10] sm:$0xff]
    %v148 = vld [vmem:[#allocation7 + $0x18] sm:$0xff]
    %v149 = vld [vmem:[#allocation7 + $0x20] sm:$0xff]
    %v150 = vld [vmem:[#allocation7 + $0x28] sm:$0xff]
    %v151 = vld [vmem:[#allocation7 + $0x30] sm:$0xff]
    %v152 = vld [vmem:[#allocation7 + $0x38] sm:$0xff]
    %v153 = vld [vmem:[#allocation7 + $0x40] sm:$0xff]
    %v154 = vld [vmem:[#allocation7 + $0x48] sm:$0xff]
    %v155 = vld [vmem:[#allocation7 + $0x50] sm:$0xff]
    %v156 = vld [vmem:[#allocation7 + $0x58] sm:$0xff]
    %v157 = vld [vmem:[#allocation7 + $0x60] sm:$0xff]
    %v158 = vld [vmem:[#allocation7 + $0x68] sm:$0xff]
    %v159 = vld [vmem:[#allocation7 + $0x70] sm:$0xff]
    %v160 = vld [vmem:[#allocation7 + $0x78] sm:$0xff]
    %v161 = vld [vmem:[%s3] sm:$0x3]
    %v163 = vperm.slane %v161, 0
    %v164 = vperm.slane %v161, 1
    %v169 = vunpack.c.l.b16 %v127
    %v170 = vunpack.c.l.b16 %v128
    %v171 = vpack.c.b16 %v170, %v169
    %v189 = vunpack.c.l.b16 %v145
    %v190 = vunpack.c.h.b16 %v145
    %v191 = vunpack.c.l.b16 %v146
    %v192 = vunpack.c.h.b16 %v146
    %v193 = vunpack.c.l.b16 %v147
    %v194 = vunpack.c.h.b16 %v147
    %v195 = vunpack.c.l.b16 %v148
    %v196 = vunpack.c.h.b16 %v148
    %v197 = vunpack.c.l.b16 %v149
    %v198 = vunpack.c.h.b16 %v149
    %v199 = vunpack.c.l.b16 %v150
    %v200 = vunpack.c.h.b16 %v150
    %v201 = vunpack.c.l.b16 %v151
    %v202 = vunpack.c.h.b16 %v151
    %v203 = vunpack.c.l.b16 %v152
    %v204 = vunpack.c.h.b16 %v152
    %v205 = vunpack.c.l.b16 %v153
    %v206 = vunpack.c.h.b16 %v153
    %v207 = vunpack.c.l.b16 %v154
    %v208 = vunpack.c.h.b16 %v154
    %v209 = vunpack.c.l.b16 %v155
    %v210 = vunpack.c.h.b16 %v155
    %v211 = vunpack.c.l.b16 %v156
    %v212 = vunpack.c.h.b16 %v156
    %v213 = vunpack.c.l.b16 %v157
    %v214 = vunpack.c.h.b16 %v157
    %v215 = vunpack.c.l.b16 %v158
    %v216 = vunpack.c.h.b16 %v158
    %v217 = vunpack.c.l.b16 %v159
    %v218 = vunpack.c.h.b16 %v159
    %v219 = vunpack.c.l.b16 %v160
    %v220 = vunpack.c.h.b16 %v160
    %v221 = vpack.c.b16 %v191, %v189
    %v222 = vpack.c.b16 %v192, %v190
    %v223 = vpack.c.b16 %v195, %v193
    %v224 = vpack.c.b16 %v196, %v194
    %v225 = vpack.c.b16 %v199, %v197
    %v226 = vpack.c.b16 %v200, %v198
    %v227 = vpack.c.b16 %v203, %v201
    %v228 = vpack.c.b16 %v204, %v202
    %v229 = vpack.c.b16 %v207, %v205
    %v230 = vpack.c.b16 %v208, %v206
    %v231 = vpack.c.b16 %v211, %v209
    %v232 = vpack.c.b16 %v212, %v210
    %v233 = vpack.c.b16 %v215, %v213
    %v234 = vpack.c.b16 %v216, %v214
    %v235 = vpack.c.b16 %v219, %v217
    %v236 = vpack.c.b16 %v220, %v218
    %253 = vmatpush.bf16.msra.mxu0 %v235
    %254 = vmatpush.bf16.msra.mxu0 %v233
    %255 = vmatpush.bf16.msra.mxu0 %v231
    %256 = vmatpush.bf16.msra.mxu0 %v229
    %257 = vmatpush.bf16.msra.mxu0 %v227
    %258 = vmatpush.bf16.msra.mxu0 %v225
    %259 = vmatpush.bf16.msra.mxu0 %v223
    %260 = vmatpush.bf16.msra.mxu0 %v221
    %261 = vmatmul.bf16.gmra.mxu0 %v171
    %v262 = vpop.f32.mrf.mxu0
    %v263 = vadd.f32 %v163, %v262
    %v264 = vpop.f32.mrf.mxu0
    %v265 = vadd.f32 %v163, %v264
    %266 = vdwg.mxu0
    %267 = vmatpush.bf16.msra.mxu0 %v236
    %268 = vmatpush.bf16.msra.mxu0 %v234
    %269 = vmatpush.bf16.msra.mxu0 %v232
    %270 = vmatpush.bf16.msra.mxu0 %v230
    %271 = vmatpush.bf16.msra.mxu0 %v228
    %272 = vmatpush.bf16.msra.mxu0 %v226
    %273 = vmatpush.bf16.msra.mxu0 %v224
    %274 = vmatpush.bf16.msra.mxu0 %v222
    %275 = vmatmul.bf16.gmra.mxu0 %v171
    %v276 = vpop.f32.mrf.mxu0
    %v277 = vadd.f32 %v164, %v276
    %v278 = vpop.f32.mrf.mxu0
    %v279 = vadd.f32 %v164, %v278
    %280 = vdwg.mxu0
    %v281 = vld [vmem:[%s5] sm:$0x3]
    %v283 = vperm.slane %v281, 0
    %v284 = vperm.slane %v281, 1
    %v287 = vld [vmem:[#allocation5] sm:$0xf]
    %v288 = vld [vmem:[#allocation5 + $0x4] sm:$0xf]
    %v289 = vunpack.c.l.bf16 %v127
    %v290 = vunpack.c.l.bf16 %v128
    %v291 = vunpack.c.l.bf16 %v287
    %v292 = vunpack.c.l.bf16 %v288
    %v293 = vsub.f32 %v289, %v291
    %v294 = vsub.f32 %v290, %v292
    %v295 = vpack.c.bf16 %v294, %v293
    %v296 = vld [vmem:[#allocation8] sm:$0xff]
    %v297 = vld [vmem:[#allocation8 + $0x8] sm:$0xff]
    %v298 = vld [vmem:[#allocation8 + $0x10] sm:$0xff]
    %v299 = vld [vmem:[#allocation8 + $0x18] sm:$0xff]
    %v300 = vld [vmem:[#allocation8 + $0x20] sm:$0xff]
    %v301 = vld [vmem:[#allocation8 + $0x28] sm:$0xff]
    %v302 = vld [vmem:[#allocation8 + $0x30] sm:$0xff]
    %v303 = vld [vmem:[#allocation8 + $0x38] sm:$0xff]
    %v304 = vld [vmem:[#allocation8 + $0x40] sm:$0xff]
    %v305 = vld [vmem:[#allocation8 + $0x48] sm:$0xff]
    %v306 = vld [vmem:[#allocation8 + $0x50] sm:$0xff]
    %v307 = vld [vmem:[#allocation8 + $0x58] sm:$0xff]
    %v308 = vld [vmem:[#allocation8 + $0x60] sm:$0xff]
    %v309 = vld [vmem:[#allocation8 + $0x68] sm:$0xff]
    %v310 = vld [vmem:[#allocation8 + $0x70] sm:$0xff]
    %v311 = vld [vmem:[#allocation8 + $0x78] sm:$0xff]
    %v328 = vunpack.c.l.b16 %v296
    %v329 = vunpack.c.h.b16 %v296
    %v330 = vunpack.c.l.b16 %v297
    %v331 = vunpack.c.h.b16 %v297
    %v332 = vunpack.c.l.b16 %v298
    %v333 = vunpack.c.h.b16 %v298
    %v334 = vunpack.c.l.b16 %v299
    %v335 = vunpack.c.h.b16 %v299
    %v336 = vunpack.c.l.b16 %v300
    %v337 = vunpack.c.h.b16 %v300
    %v338 = vunpack.c.l.b16 %v301
    %v339 = vunpack.c.h.b16 %v301
    %v340 = vunpack.c.l.b16 %v302
    %v341 = vunpack.c.h.b16 %v302
    %v342 = vunpack.c.l.b16 %v303
    %v343 = vunpack.c.h.b16 %v303
    %v344 = vunpack.c.l.b16 %v304
    %v345 = vunpack.c.h.b16 %v304
    %v346 = vunpack.c.l.b16 %v305
    %v347 = vunpack.c.h.b16 %v305
    %v348 = vunpack.c.l.b16 %v306
    %v349 = vunpack.c.h.b16 %v306
    %v350 = vunpack.c.l.b16 %v307
    %v351 = vunpack.c.h.b16 %v307
    %v352 = vunpack.c.l.b16 %v308
    %v353 = vunpack.c.h.b16 %v308
    %v354 = vunpack.c.l.b16 %v309
    %v355 = vunpack.c.h.b16 %v309
    %v356 = vunpack.c.l.b16 %v310
    %v357 = vunpack.c.h.b16 %v310
    %v358 = vunpack.c.l.b16 %v311
    %v359 = vunpack.c.h.b16 %v311
    %v360 = vpack.c.b16 %v330, %v328
    %v361 = vpack.c.b16 %v331, %v329
    %v362 = vpack.c.b16 %v334, %v332
    %v363 = vpack.c.b16 %v335, %v333
    %v364 = vpack.c.b16 %v338, %v336
    %v365 = vpack.c.b16 %v339, %v337
    %v366 = vpack.c.b16 %v342, %v340
    %v367 = vpack.c.b16 %v343, %v341
    %v368 = vpack.c.b16 %v346, %v344
    %v369 = vpack.c.b16 %v347, %v345
    %v370 = vpack.c.b16 %v350, %v348
    %v371 = vpack.c.b16 %v351, %v349
    %v372 = vpack.c.b16 %v354, %v352
    %v373 = vpack.c.b16 %v355, %v353
    %v374 = vpack.c.b16 %v358, %v356
    %v375 = vpack.c.b16 %v359, %v357
    %392 = vmatpush.bf16.msra.mxu0 %v374
    %393 = vmatpush.bf16.msra.mxu0 %v372
    %394 = vmatpush.bf16.msra.mxu0 %v370
    %395 = vmatpush.bf16.msra.mxu0 %v368
    %396 = vmatpush.bf16.msra.mxu0 %v366
    %397 = vmatpush.bf16.msra.mxu0 %v364
    %398 = vmatpush.bf16.msra.mxu0 %v362
    %399 = vmatpush.bf16.msra.mxu0 %v360
    %400 = vmatmul.bf16.gmra.mxu0 %v295
    %v401 = vpop.f32.mrf.mxu0
    %v402 = vadd.f32 %v283, %v401
    %v403 = vpop.f32.mrf.mxu0
    %v404 = vadd.f32 %v283, %v403
    %405 = vdwg.mxu0
    %406 = vmatpush.bf16.msra.mxu0 %v375
    %407 = vmatpush.bf16.msra.mxu0 %v373
    %408 = vmatpush.bf16.msra.mxu0 %v371
    %409 = vmatpush.bf16.msra.mxu0 %v369
    %410 = vmatpush.bf16.msra.mxu0 %v367
    %411 = vmatpush.bf16.msra.mxu0 %v365
    %412 = vmatpush.bf16.msra.mxu0 %v363
    %413 = vmatpush.bf16.msra.mxu0 %v361
    %414 = vmatmul.bf16.gmra.mxu0 %v295
    %v415 = vpop.f32.mrf.mxu0
    %v416 = vadd.f32 %v284, %v415
    %v417 = vpop.f32.mrf.mxu0
    %v418 = vadd.f32 %v284, %v417
    %419 = vdwg.mxu0
    %v420 = vmul.f32 %v263, %v402
    %v421 = vmul.f32 %v265, %v404
    %v422 = vpack.c.bf16 %v421, %v420
    %v439 = vunpack.c.l.b16 %v129
    %v440 = vunpack.c.l.b16 %v130
    %v441 = vunpack.c.l.b16 %v131
    %v442 = vunpack.c.l.b16 %v132
    %v443 = vunpack.c.l.b16 %v133
    %v444 = vunpack.c.l.b16 %v134
    %v445 = vunpack.c.l.b16 %v135
    %v446 = vunpack.c.l.b16 %v136
    %v447 = vunpack.c.l.b16 %v137
    %v448 = vunpack.c.l.b16 %v138
    %v449 = vunpack.c.l.b16 %v139
    %v450 = vunpack.c.l.b16 %v140
    %v451 = vunpack.c.l.b16 %v141
    %v452 = vunpack.c.l.b16 %v142
    %v453 = vunpack.c.l.b16 %v143
    %v454 = vunpack.c.l.b16 %v144
    %v455 = vpack.c.b16 %v440, %v439
    %v456 = vpack.c.b16 %v442, %v441
    %v457 = vpack.c.b16 %v444, %v443
    %v458 = vpack.c.b16 %v446, %v445
    %v459 = vpack.c.b16 %v448, %v447
    %v460 = vpack.c.b16 %v450, %v449
    %v461 = vpack.c.b16 %v452, %v451
    %v462 = vpack.c.b16 %v454, %v453
    %471 = vmatpush.bf16.msra.mxu0 %v462
    %472 = vmatpush.bf16.msra.mxu0 %v461
    %473 = vmatpush.bf16.msra.mxu0 %v460
    %474 = vmatpush.bf16.msra.mxu0 %v459
    %475 = vmatpush.bf16.msra.mxu0 %v458
    %476 = vmatpush.bf16.msra.mxu0 %v457
    %477 = vmatpush.bf16.msra.mxu0 %v456
    %478 = vmatpush.bf16.msra.mxu0 %v455
    %479 = vmatmul.bf16.gmra.mxu0 %v422
    %v480 = vpop.f32.mrf.mxu0
    %v481 = vadd.f32 0.0, %v480
    %v482 = vpop.f32.mrf.mxu0
    %v483 = vadd.f32 0.0, %v482
    %484 = vdwg.mxu0
    %s485 = scalar_lea.vmem [#allocation5], 8
    %v486 = vld [vmem:[%s485] sm:$0xf]
    %v487 = vld [vmem:[%s485 + $0x4] sm:$0xf]
    %v488 = vunpack.c.l.bf16 %v486
    %v489 = vunpack.c.l.bf16 %v487
    %v490 = vsub.f32 %v289, %v488
    %v491 = vsub.f32 %v290, %v489
    %v492 = vpack.c.bf16 %v491, %v490
    %493 = vmatpush.bf16.msra.mxu0 %v374
    %494 = vmatpush.bf16.msra.mxu0 %v372
    %495 = vmatpush.bf16.msra.mxu0 %v370
    %496 = vmatpush.bf16.msra.mxu0 %v368
    %497 = vmatpush.bf16.msra.mxu0 %v366
    %498 = vmatpush.bf16.msra.mxu0 %v364
    %499 = vmatpush.bf16.msra.mxu0 %v362
    %500 = vmatpush.bf16.msra.mxu0 %v360
    %501 = vmatmul.bf16.gmra.mxu0 %v492
    %v502 = vpop.f32.mrf.mxu0
    %v503 = vadd.f32 %v283, %v502
    %v504 = vpop.f32.mrf.mxu0
    %v505 = vadd.f32 %v283, %v504
    %506 = vdwg.mxu0
    %507 = vmatpush.bf16.msra.mxu0 %v375
    %508 = vmatpush.bf16.msra.mxu0 %v373
    %509 = vmatpush.bf16.msra.mxu0 %v371
    %510 = vmatpush.bf16.msra.mxu0 %v369
    %511 = vmatpush.bf16.msra.mxu0 %v367
    %512 = vmatpush.bf16.msra.mxu0 %v365
    %513 = vmatpush.bf16.msra.mxu0 %v363
    %514 = vmatpush.bf16.msra.mxu0 %v361
    %515 = vmatmul.bf16.gmra.mxu0 %v492
    %v516 = vpop.f32.mrf.mxu0
    %v517 = vadd.f32 %v284, %v516
    %v518 = vpop.f32.mrf.mxu0
    %v519 = vadd.f32 %v284, %v518
    %520 = vdwg.mxu0
    %v521 = vmul.f32 %v263, %v503
    %v522 = vmul.f32 %v265, %v505
    %v523 = vpack.c.bf16 %v522, %v521
    %524 = vmatpush.bf16.msra.mxu0 %v462
    %525 = vmatpush.bf16.msra.mxu0 %v461
    %526 = vmatpush.bf16.msra.mxu0 %v460
    %527 = vmatpush.bf16.msra.mxu0 %v459
    %528 = vmatpush.bf16.msra.mxu0 %v458
    %529 = vmatpush.bf16.msra.mxu0 %v457
    %530 = vmatpush.bf16.msra.mxu0 %v456
    %531 = vmatpush.bf16.msra.mxu0 %v455
    %532 = vmatmul.bf16.gmra.mxu0 %v523
    %v533 = vpop.f32.mrf.mxu0
    %v534 = vadd.f32 0.0, %v533
    %v535 = vpop.f32.mrf.mxu0
    %v536 = vadd.f32 0.0, %v535
    %537 = vdwg.mxu0
    %v538 = vmax.f32 %v481, %v534
    %v539 = vmax.f32 %v483, %v536
    %v540 = vsub.f32 %v481, %v538
    %v541 = vsub.f32 %v483, %v539
    %v542 = vmul.f32 %v540, 1.442695
    %v543 = vpow.pop %v542
    %v544 = vmul.f32 %v541, 1.442695
    %v545 = vpow.pop %v544
    %v546 = vsub.f32 %v534, %v538
    %v547 = vsub.f32 %v536, %v539
    %v548 = vmul.f32 %v546, 1.442695
    %v549 = vpow.pop %v548
    %v550 = vmul.f32 %v547, 1.442695
    %v551 = vpow.pop %v550
    %v552 = vmul.f32 %v543, %v416
    %v553 = vmul.f32 %v545, %v418
    %v554 = vmul.f32 %v549, %v517
    %v555 = vmul.f32 %v551, %v519
    %v556 = vadd.f32 %v552, %v554
    %v557 = vadd.f32 %v553, %v555
    %v558 = vadd.f32 %v543, %v549
    %v559 = vadd.f32 %v545, %v551
    %s560 = scalar_lea.vmem [#allocation5], 16
    %v561 = vld [vmem:[%s560] sm:$0xf]
    %v562 = vld [vmem:[%s560 + $0x4] sm:$0xf]
    %v563 = vunpack.c.l.bf16 %v561
    %v564 = vunpack.c.l.bf16 %v562
    %v565 = vsub.f32 %v289, %v563
    %v566 = vsub.f32 %v290, %v564
    %v567 = vpack.c.bf16 %v566, %v565
    %568 = vmatpush.bf16.msra.mxu0 %v374
    %569 = vmatpush.bf16.msra.mxu0 %v372
    %570 = vmatpush.bf16.msra.mxu0 %v370
    %571 = vmatpush.bf16.msra.mxu0 %v368
    %572 = vmatpush.bf16.msra.mxu0 %v366
    %573 = vmatpush.bf16.msra.mxu0 %v364
    %574 = vmatpush.bf16.msra.mxu0 %v362
    %575 = vmatpush.bf16.msra.mxu0 %v360
    %576 = vmatmul.bf16.gmra.mxu0 %v567
    %v577 = vpop.f32.mrf.mxu0
    %v578 = vadd.f32 %v283, %v577
    %v579 = vpop.f32.mrf.mxu0
    %v580 = vadd.f32 %v283, %v579
    %581 = vdwg.mxu0
    %582 = vmatpush.bf16.msra.mxu0 %v375
    %583 = vmatpush.bf16.msra.mxu0 %v373
    %584 = vmatpush.bf16.msra.mxu0 %v371
    %585 = vmatpush.bf16.msra.mxu0 %v369
    %586 = vmatpush.bf16.msra.mxu0 %v367
    %587 = vmatpush.bf16.msra.mxu0 %v365
    %588 = vmatpush.bf16.msra.mxu0 %v363
    %589 = vmatpush.bf16.msra.mxu0 %v361
    %590 = vmatmul.bf16.gmra.mxu0 %v567
    %v591 = vpop.f32.mrf.mxu0
    %v592 = vadd.f32 %v284, %v591
    %v593 = vpop.f32.mrf.mxu0
    %v594 = vadd.f32 %v284, %v593
    %595 = vdwg.mxu0
    %v596 = vmul.f32 %v263, %v578
    %v597 = vmul.f32 %v265, %v580
    %v598 = vpack.c.bf16 %v597, %v596
    %599 = vmatpush.bf16.msra.mxu0 %v462
    %600 = vmatpush.bf16.msra.mxu0 %v461
    %601 = vmatpush.bf16.msra.mxu0 %v460
    %602 = vmatpush.bf16.msra.mxu0 %v459
    %603 = vmatpush.bf16.msra.mxu0 %v458
    %604 = vmatpush.bf16.msra.mxu0 %v457
    %605 = vmatpush.bf16.msra.mxu0 %v456
    %606 = vmatpush.bf16.msra.mxu0 %v455
    %607 = vmatmul.bf16.gmra.mxu0 %v598
    %v608 = vpop.f32.mrf.mxu0
    %v609 = vadd.f32 0.0, %v608
    %v610 = vpop.f32.mrf.mxu0
    %v611 = vadd.f32 0.0, %v610
    %612 = vdwg.mxu0
    %v613 = vmax.f32 %v538, %v609
    %v614 = vmax.f32 %v539, %v611
    %v615 = vsub.f32 %v538, %v613
    %v616 = vsub.f32 %v539, %v614
    %v617 = vmul.f32 %v615, 1.442695
    %v618 = vpow.pop %v617
    %v619 = vmul.f32 %v616, 1.442695
    %v620 = vpow.pop %v619
    %v621 = vsub.f32 %v609, %v613
    %v622 = vsub.f32 %v611, %v614
    %v623 = vmul.f32 %v621, 1.442695
    %v624 = vpow.pop %v623
    %v625 = vmul.f32 %v622, 1.442695
    %v626 = vpow.pop %v625
    %v627 = vmul.f32 %v618, %v556
    %v628 = vmul.f32 %v620, %v557
    %v629 = vmul.f32 %v624, %v592
    %v630 = vmul.f32 %v626, %v594
    %v631 = vadd.f32 %v627, %v629
    %v632 = vadd.f32 %v628, %v630
    %v633 = vmul.f32 %v618, %v558
    %v634 = vmul.f32 %v620, %v559
    %v635 = vadd.f32 %v633, %v624
    %v636 = vadd.f32 %v634, %v626
    %v637 = vrcp.pop %v635
    %v638 = vrcp.pop %v636
    %v639 = vmul.f32 %v631, %v637
    %v640 = vmul.f32 %v632, %v638
    %v641 = vpack.c.bf16 %v640, %v639
    %v642 = vld [vmem:[#allocation10] sm:$0xf]
    %v643 = vld [vmem:[#allocation10 + $0x4] sm:$0xf]
    %v644 = vld [vmem:[#allocation10 + $0x8] sm:$0xf]
    %v645 = vld [vmem:[#allocation10 + $0xc] sm:$0xf]
    %v646 = vld [vmem:[#allocation10 + $0x10] sm:$0xf]
    %v647 = vld [vmem:[#allocation10 + $0x14] sm:$0xf]
    %v648 = vld [vmem:[#allocation10 + $0x18] sm:$0xf]
    %v649 = vld [vmem:[#allocation10 + $0x1c] sm:$0xf]
    %v650 = vld [vmem:[#allocation10 + $0x20] sm:$0xf]
    %v651 = vld [vmem:[#allocation10 + $0x24] sm:$0xf]
    %v652 = vld [vmem:[#allocation10 + $0x28] sm:$0xf]
    %v653 = vld [vmem:[#allocation10 + $0x2c] sm:$0xf]
    %v654 = vld [vmem:[#allocation10 + $0x30] sm:$0xf]
    %v655 = vld [vmem:[#allocation10 + $0x34] sm:$0xf]
    %v656 = vld [vmem:[#allocation10 + $0x38] sm:$0xf]
    %v657 = vld [vmem:[#allocation10 + $0x3c] sm:$0xf]
    %v658 = vld [vmem:[%s7] sm:$0x1]
    %v660 = vperm.slane %v658, 0
    %v678 = vunpack.c.l.b16 %v642
    %v679 = vunpack.c.l.b16 %v643
    %v680 = vunpack.c.l.b16 %v644
    %v681 = vunpack.c.l.b16 %v645
    %v682 = vunpack.c.l.b16 %v646
    %v683 = vunpack.c.l.b16 %v647
    %v684 = vunpack.c.l.b16 %v648
    %v685 = vunpack.c.l.b16 %v649
    %v686 = vunpack.c.l.b16 %v650
    %v687 = vunpack.c.l.b16 %v651
    %v688 = vunpack.c.l.b16 %v652
    %v689 = vunpack.c.l.b16 %v653
    %v690 = vunpack.c.l.b16 %v654
    %v691 = vunpack.c.l.b16 %v655
    %v692 = vunpack.c.l.b16 %v656
    %v693 = vunpack.c.l.b16 %v657
    %v694 = vpack.c.b16 %v679, %v678
    %v695 = vpack.c.b16 %v681, %v680
    %v696 = vpack.c.b16 %v683, %v682
    %v697 = vpack.c.b16 %v685, %v684
    %v698 = vpack.c.b16 %v687, %v686
    %v699 = vpack.c.b16 %v689, %v688
    %v700 = vpack.c.b16 %v691, %v690
    %v701 = vpack.c.b16 %v693, %v692
    %710 = vmatpush.bf16.msra.mxu0 %v701
    %711 = vmatpush.bf16.msra.mxu0 %v700
    %712 = vmatpush.bf16.msra.mxu0 %v699
    %713 = vmatpush.bf16.msra.mxu0 %v698
    %714 = vmatpush.bf16.msra.mxu0 %v697
    %715 = vmatpush.bf16.msra.mxu0 %v696
    %716 = vmatpush.bf16.msra.mxu0 %v695
    %717 = vmatpush.bf16.msra.mxu0 %v694
    %718 = vmatmul.bf16.gmra.mxu0 %v641
    %v719 = vpop.f32.mrf.mxu0
    %v720 = vadd.f32 %v660, %v719
    %v721 = vpop.f32.mrf.mxu0
    %v722 = vadd.f32 %v660, %v721
    %723 = vdwg.mxu0
    %v724 = vadd.f32 %v277, %v720
    %v725 = vadd.f32 %v279, %v722
    %726 = vst [vmem:[#allocation13] sm:$0xff] %v724
    %727 = vst [vmem:[#allocation13 + $0x8] sm:$0xff] %v725
    // Predicated region
    $region62: #{tpu_custom_call.1} parent=1 // pred_check
      _
    $region63: #{tpu_custom_call.1} parent=1 // pred_check_branch
      %729 = sbr.rel (0) target = $region65
    $region64: #{tpu_custom_call.1} parent=1 // pred_region
      %731 = vsyncadd [#allocation4], 0
      %s732 = sshll.u32 [#allocation13], 4
      %s733 = int_to_ptr.vmem [resolvable:$true] %s732
      %s734 = sshll.u32 %s9, 4
      %s735 = int_to_ptr.hbm [resolvable:$true] %s734
      %740 = dma.vmem_to_hbm [thread:$0]  %s733, 256, %s735, [#allocation4], 128, 128, 8
    $region65: #{tpu_custom_call.1} parent=1 // pred_fallthru
      _
    // Predicated region
    $region66: #{tpu_custom_call.1} parent=1 // pred_check
      _
    $region67: #{tpu_custom_call.1} parent=1 // pred_check_branch
      %742 = sbr.rel (0) target = $region69
    $region68: #{tpu_custom_call.1} parent=1 // pred_region
      %744 = dma.done [#allocation4], 256
    $region69: #{tpu_custom_call.1} parent=1 // pred_fallthru
      _
    %745 = vsyncpa [#allocation3], 1
    %746 = vsyncpa [#allocation6], 1
    %747 = vsyncpa [#allocation9], 1
    %748 = vsyncpa [#allocation12], 1
    %749 = vsyncpa [#allocation4], 1

</llo_original>
